<compile_context>
chip_gen: v5e
topology: v5e:2x2
jax: 0.10.0
libtpu: 0.0.40
codegen_flags: <defaults>
</compile_context>

<pallas_src>
import functools

import jax
import jax.numpy as jnp
from jax import lax
from jax.experimental import pallas as pl
from jax.experimental.pallas import tpu as pltpu


def coattention_kernel(qt_ref, vp_ref, w_ref, wh_ref, out_ref, *, B, d, T, N):
    """Whole-problem kernel (everything resident in VMEM).

    qt_ref : [B*T, d]  bf16  (Q pre-transposed; rows b*T..(b+1)*T = batch b)
    vp_ref : [d, B*N]  bf16  (V, batch-blocked along lanes)
    w_ref  : [3d, d]   bf16  (rows: W_b ; W_v ; W_q)
    wh_ref : [d, 2]    f32   (col 0: w_hv^T, col 1: w_hq^T)
    out_ref: [2B, d]   f32   (rows 0..B-1: q_hat_b, rows B..2B-1: v_hat_b)
    """
    f32 = jnp.float32
    bf16 = jnp.bfloat16

    dn_nn = (((1,), (0,)), ((), ()))   # A[m,k] @ B[k,n]      (MXU native)
    dn_nt = (((1,), (1,)), ((), ()))   # A[m,k] @ B[n,k]^T    (transpose-RHS, MXU native)

    # Weight slab views (free static ref slices; 2d/3d are sublane-aligned
    # for d a multiple of 16).
    W_bv = w_ref[0:2 * d, :]           # [2d, d] bf16 (W_b stacked on W_v)
    W_q = w_ref[2 * d:3 * d, :]        # [d, d]  bf16
    whv_col = wh_ref[:, 0:1]           # [d, 1]  f32
    whq_col = wh_ref[:, 1:2]           # [d, 1]  f32

    # ---- shared-weight matmuls, all batches at once (lane dense) ----------
    # [2d,d]@[d,B*N] and W_q@Qt^T -> [d,B*T]; f32 accumulation, cast to bf16
    # exactly once (these are consumed as bf16 MXU operands below).
    WbWvV = lax.dot_general(W_bv, vp_ref[...], dn_nn,
                            preferred_element_type=f32).astype(bf16)   # [2d, B*N]
    WqQ = lax.dot_general(W_q, qt_ref[...], dn_nt,
                          preferred_element_type=f32).astype(bf16)     # [d, B*T]
    WbV = WbWvV[:d]                    # [d, B*N] bf16
    WvV = WbWvV[d:]                    # [d, B*N] bf16

    lv_rows, lq_rows = [], []
    for b in range(B):                 # B is small & static -> unrolled
        Qtb = qt_ref[b * T:(b + 1) * T, :]        # [T, d] bf16 (ref slice)
        WbVb = WbV[:, b * N:(b + 1) * N]          # [d, N] bf16
        WvVb = WvV[:, b * N:(b + 1) * N]          # [d, N] bf16
        WqQb = WqQ[:, b * T:(b + 1) * T]          # [d, T] bf16

        # C_b = tanh(Qb^T @ (W_b V_b)) : native [T,d]@[d,N], tanh in f32.
        Cb16 = jnp.tanh(
            lax.dot_general(Qtb, WbVb, dn_nn, preferred_element_type=f32)
        ).astype(bf16)                            # [T, N]

        # Hv_b = tanh(WvV_b + WqQ_b @ C_b)        (bf16 operands, f32 accum/add)
        Hvb = jnp.tanh(
            WvVb + lax.dot_general(WqQb, Cb16, dn_nn, preferred_element_type=f32)
        )                                         # [d, N] f32
        # Hq_b = tanh(WqQ_b + WvV_b @ C_b^T)      (transpose-RHS contraction)
        Hqb = jnp.tanh(
            WqQb + lax.dot_general(WvVb, Cb16, dn_nt, preferred_element_type=f32)
        )                                         # [d, T] f32

        # Logits in f32 on the VPU/XLU (sublane broadcast-multiply + reduce);
        # keeps the softmax path full-precision and off the MXU.
        lv_rows.append(jnp.sum(whv_col * Hvb, axis=0, keepdims=True))  # [1, N]
        lq_rows.append(jnp.sum(whq_col * Hqb, axis=0, keepdims=True))  # [1, T]

    # ---- softmax over the *batch* axis (PyTorch legacy implicit dim=0) ----
    def softmax_over_rows(rows):
        m = rows[0]
        for r in rows[1:]:
            m = jnp.maximum(m, r)
        exps = [jnp.exp(r - m) for r in rows]
        den = exps[0]
        for e in exps[1:]:
            den = den + e
        inv = pl.reciprocal(den, approx=False)    # exact: reference parity
        return [e * inv for e in exps]

    av_rows = softmax_over_rows(lv_rows)          # B x [1, N] f32
    aq_rows = softmax_over_rows(lq_rows)          # B x [1, T] f32

    # ---- epilogue: lane-dense [1, d] rows straight from the MXU -----------
    # q_hat_b = aq_b @ Qt_b   (standard)        -> [1, d]
    # v_hat_b = av_b @ V_b^T  (transpose-RHS)   -> [1, d]
    rows = []
    for b in range(B):
        rows.append(lax.dot_general(aq_rows[b].astype(bf16),
                                    qt_ref[b * T:(b + 1) * T, :],
                                    dn_nn, preferred_element_type=f32))
    for b in range(B):
        rows.append(lax.dot_general(av_rows[b].astype(bf16),
                                    vp_ref[:, b * N:(b + 1) * N],
                                    dn_nt, preferred_element_type=f32))

    out_ref[...] = jnp.concatenate(rows, axis=0).astype(out_ref.dtype)  # [2B, d]


def coattention_forward(Q, V, W_b, W_v, W_q, w_hv, w_hq):
    """Q: [B, d, T], V: [B, d, N]  ->  (q_hat [B, d], v_hat [B, d])."""
    B, d, T = Q.shape
    _, _, N = V.shape
    bf16 = jnp.bfloat16

    # Layout plumbing / parameter packing / bf16 conversion in XLA (outside
    # the kernel).  Q is pre-transposed so no contraction needs transpose_lhs.
    Qt = jnp.transpose(Q, (0, 2, 1)).reshape(B * T, d).astype(bf16)   # [B*T, d]
    Vp = jnp.transpose(V, (1, 0, 2)).reshape(d, B * N).astype(bf16)   # [d, B*N]
    Wall = jnp.concatenate([W_b, W_v, W_q], axis=0).astype(bf16)      # [3d, d]
    whT = jnp.concatenate([w_hv.T, w_hq.T], axis=1).astype(jnp.float32)  # [d, 2]

    vmem = pl.BlockSpec(memory_space=pltpu.MemorySpace.VMEM)
    out = pl.pallas_call(
        functools.partial(coattention_kernel, B=B, d=d, T=T, N=N),
        out_shape=jax.ShapeDtypeStruct((2 * B, d), jnp.float32),
        in_specs=[vmem, vmem, vmem, vmem],
        out_specs=vmem,
        compiler_params=pltpu.CompilerParams(vmem_limit_bytes=32 * 1024 * 1024),
    )(Qt, Vp, Wall, whT)

    q_hat = out[:B]      # [B, d]  (already lane-dense rows; no transpose)
    v_hat = out[B:]      # [B, d]
    return q_hat, v_hat


def _softmax_axis0(x):
    m = jnp.max(x, axis=0, keepdims=True)
    e = jnp.exp(x - m)
    return e / jnp.sum(e, axis=0, keepdims=True)


def coattention_reference(Q, V, W_b, W_v, W_q, w_hv, w_hq):
    """Plain-JAX f32 mirror of the PyTorch forward (incl. softmax over dim=0)."""
    WbV = jnp.einsum('ij,bjn->bin', W_b, V)
    C = jnp.tanh(jnp.einsum('bit,bin->btn', Q, WbV))           # QT @ (W_b V)
    WvV = jnp.einsum('kj,bjn->bkn', W_v, V)
    WqQ = jnp.einsum('kj,bjt->bkt', W_q, Q)
    Hv = jnp.tanh(WvV + jnp.einsum('bkt,btn->bkn', WqQ, C))
    av = _softmax_axis0(jnp.einsum('ok,bkn->bon', w_hv, Hv))   # [B,1,N], axis 0
    v_hat = jnp.einsum('bon,bdn->bod', av, V)[:, 0, :]
    Hq = jnp.tanh(WqQ + jnp.einsum('bkn,btn->bkt', WvV, C))
    aq = _softmax_axis0(jnp.einsum('ok,bkt->bot', w_hq, Hq))   # [B,1,T], axis 0
    q_hat = jnp.einsum('bot,bdt->bod', aq, Q)[:, 0, :]
    return q_hat, v_hat


if __name__ == "__main__":
    B, d, T, N = 2, 32, 8, 16

    key = jax.random.PRNGKey(0)
    kq, kv, k1, k2, k3, k4, k5 = jax.random.split(key, 7)
    Q = jax.random.normal(kq, (B, d, T), dtype=jnp.float32)
    V = jax.random.normal(kv, (B, d, N), dtype=jnp.float32)
    # Parameters (module leaves them uninitialized; we init deterministically).
    W_b = 0.1 * jax.random.normal(k1, (d, d), dtype=jnp.float32)
    W_v = 0.1 * jax.random.normal(k2, (d, d), dtype=jnp.float32)
    W_q = 0.1 * jax.random.normal(k3, (d, d), dtype=jnp.float32)
    w_hv = 0.1 * jax.random.normal(k4, (1, d), dtype=jnp.float32)
    w_hq = 0.1 * jax.random.normal(k5, (1, d), dtype=jnp.float32)

    q_hat, v_hat = coattention_forward(Q, V, W_b, W_v, W_q, w_hv, w_hq)
    jax.block_until_ready((q_hat, v_hat))

    q_ref, v_ref = coattention_reference(Q, V, W_b, W_v, W_q, w_hv, w_hq)
    assert q_hat.shape == (B, d) and v_hat.shape == (B, d)
    # bf16 Q/V/weight inputs (DMA-halving, per perf review) + bf16 MXU operands
    # with f32 accumulation -> tolerance sized for bf16 quantization error vs
    # the pure-f32 reference.
    assert jnp.allclose(q_hat, q_ref, atol=3e-2, rtol=3e-2)
    assert jnp.allclose(v_hat, v_ref, atol=3e-2, rtol=3e-2)

    print("KERNEL_OK")
</pallas_src>

<mosaic_0001>
module attributes {stable_mosaic.version = 11 : i64} {
  func.func @coattention_kernel(%arg0: memref<16x32xbf16, #tpu.memory_space<vmem>>, %arg1: memref<32x32xbf16, #tpu.memory_space<vmem>>, %arg2: memref<96x32xbf16, #tpu.memory_space<vmem>>, %arg3: memref<32x2xf32, #tpu.memory_space<vmem>>, %arg4: memref<4x32xf32, #tpu.memory_space<vmem>>) attributes {dimension_semantics = [], scalar_prefetch = 0 : i64, scratch_operands = 0 : i64, tpu.core_type = #tpu.core_type<tc>} {
    %c0 = arith.constant 0 : index
    %c0_0 = arith.constant 0 : index
    %0 = vector.load %arg2[%c0, %c0_0] : memref<96x32xbf16, #tpu.memory_space<vmem>>, vector<64x32xbf16>
    %c64 = arith.constant 64 : index
    %c0_1 = arith.constant 0 : index
    %1 = vector.load %arg2[%c64, %c0_1] : memref<96x32xbf16, #tpu.memory_space<vmem>>, vector<32x32xbf16>
    %c0_2 = arith.constant 0 : index
    %c0_3 = arith.constant 0 : index
    %2 = vector.load %arg3[%c0_2, %c0_3] : memref<32x2xf32, #tpu.memory_space<vmem>>, vector<32x1xf32>
    %c0_4 = arith.constant 0 : index
    %c1 = arith.constant 1 : index
    %3 = vector.load %arg3[%c0_4, %c1] : memref<32x2xf32, #tpu.memory_space<vmem>>, vector<32x1xf32>
    %c0_5 = arith.constant 0 : index
    %c0_6 = arith.constant 0 : index
    %4 = vector.load %arg1[%c0_5, %c0_6] : memref<32x32xbf16, #tpu.memory_space<vmem>>, vector<32x32xbf16>
    %cst = arith.constant dense<0.000000e+00> : vector<64x32xf32>
    %5 = tpu.matmul %0, %4, %cst {dimension_numbers = #tpu.dot_dimension_numbers<[1], [0], [0], [1], [0, 0, 1, 1], [], []>} : vector<64x32xbf16>, vector<32x32xbf16>, vector<64x32xf32> -> vector<64x32xf32>
    %6 = arith.truncf %5 : vector<64x32xf32> to vector<64x32xbf16>
    %c0_7 = arith.constant 0 : index
    %c0_8 = arith.constant 0 : index
    %7 = vector.load %arg0[%c0_7, %c0_8] : memref<16x32xbf16, #tpu.memory_space<vmem>>, vector<16x32xbf16>
    %cst_9 = arith.constant dense<0.000000e+00> : vector<32x16xf32>
    %8 = tpu.matmul %1, %7, %cst_9 {dimension_numbers = #tpu.dot_dimension_numbers<[1], [1], [0], [0], [0, 0, 1, 0], [], []>} : vector<32x32xbf16>, vector<16x32xbf16>, vector<32x16xf32> -> vector<32x16xf32>
    %9 = arith.truncf %8 : vector<32x16xf32> to vector<32x16xbf16>
    %10 = vector.extract_strided_slice %6 {offsets = [0, 0], sizes = [32, 32], strides = [1, 1]} : vector<64x32xbf16> to vector<32x32xbf16>
    %11 = vector.extract_strided_slice %6 {offsets = [32, 0], sizes = [32, 32], strides = [1, 1]} : vector<64x32xbf16> to vector<32x32xbf16>
    %c0_10 = arith.constant 0 : index
    %c0_11 = arith.constant 0 : index
    %12 = vector.load %arg0[%c0_10, %c0_11] : memref<16x32xbf16, #tpu.memory_space<vmem>>, vector<8x32xbf16>
    %13 = vector.extract_strided_slice %10 {offsets = [0, 0], sizes = [32, 16], strides = [1, 1]} : vector<32x32xbf16> to vector<32x16xbf16>
    %14 = vector.extract_strided_slice %11 {offsets = [0, 0], sizes = [32, 16], strides = [1, 1]} : vector<32x32xbf16> to vector<32x16xbf16>
    %15 = vector.extract_strided_slice %9 {offsets = [0, 0], sizes = [32, 8], strides = [1, 1]} : vector<32x16xbf16> to vector<32x8xbf16>
    %cst_12 = arith.constant dense<0.000000e+00> : vector<8x16xf32>
    %16 = tpu.matmul %12, %13, %cst_12 {dimension_numbers = #tpu.dot_dimension_numbers<[1], [0], [0], [1], [0, 0, 1, 1], [], []>} : vector<8x32xbf16>, vector<32x16xbf16>, vector<8x16xf32> -> vector<8x16xf32>
    %17 = math.tanh %16 : vector<8x16xf32>
    %18 = arith.truncf %17 : vector<8x16xf32> to vector<8x16xbf16>
    %cst_13 = arith.constant dense<0.000000e+00> : vector<32x16xf32>
    %19 = tpu.matmul %15, %18, %cst_13 {dimension_numbers = #tpu.dot_dimension_numbers<[1], [0], [0], [1], [0, 0, 1, 1], [], []>} : vector<32x8xbf16>, vector<8x16xbf16>, vector<32x16xf32> -> vector<32x16xf32>
    %20 = arith.extf %14 : vector<32x16xbf16> to vector<32x16xf32>
    %21 = arith.addf %20, %19 : vector<32x16xf32>
    %22 = math.tanh %21 : vector<32x16xf32>
    %cst_14 = arith.constant dense<0.000000e+00> : vector<32x8xf32>
    %23 = tpu.matmul %14, %18, %cst_14 {dimension_numbers = #tpu.dot_dimension_numbers<[1], [1], [0], [0], [0, 0, 1, 0], [], []>} : vector<32x16xbf16>, vector<8x16xbf16>, vector<32x8xf32> -> vector<32x8xf32>
    %24 = arith.extf %15 : vector<32x8xbf16> to vector<32x8xf32>
    %25 = arith.addf %24, %23 : vector<32x8xf32>
    %26 = math.tanh %25 : vector<32x8xf32>
    %27 = vector.broadcast %2 : vector<32x1xf32> to vector<32x16xf32>
    %28 = arith.mulf %27, %22 : vector<32x16xf32>
    %cst_15 = arith.constant dense<0.000000e+00> : vector<16xf32>
    %29 = vector.multi_reduction <add>, %28, %cst_15 [0] : vector<32x16xf32> to vector<16xf32>
    %30 = vector.shape_cast %29 : vector<16xf32> to vector<1x16xf32>
    %31 = vector.broadcast %3 : vector<32x1xf32> to vector<32x8xf32>
    %32 = arith.mulf %31, %26 : vector<32x8xf32>
    %cst_16 = arith.constant dense<0.000000e+00> : vector<8xf32>
    %33 = vector.multi_reduction <add>, %32, %cst_16 [0] : vector<32x8xf32> to vector<8xf32>
    %34 = vector.shape_cast %33 : vector<8xf32> to vector<1x8xf32>
    %c8 = arith.constant 8 : index
    %c0_17 = arith.constant 0 : index
    %35 = vector.load %arg0[%c8, %c0_17] : memref<16x32xbf16, #tpu.memory_space<vmem>>, vector<8x32xbf16>
    %36 = vector.extract_strided_slice %10 {offsets = [0, 16], sizes = [32, 16], strides = [1, 1]} : vector<32x32xbf16> to vector<32x16xbf16>
    %37 = vector.extract_strided_slice %11 {offsets = [0, 16], sizes = [32, 16], strides = [1, 1]} : vector<32x32xbf16> to vector<32x16xbf16>
    %38 = vector.extract_strided_slice %9 {offsets = [0, 8], sizes = [32, 8], strides = [1, 1]} : vector<32x16xbf16> to vector<32x8xbf16>
    %cst_18 = arith.constant dense<0.000000e+00> : vector<8x16xf32>
    %39 = tpu.matmul %35, %36, %cst_18 {dimension_numbers = #tpu.dot_dimension_numbers<[1], [0], [0], [1], [0, 0, 1, 1], [], []>} : vector<8x32xbf16>, vector<32x16xbf16>, vector<8x16xf32> -> vector<8x16xf32>
    %40 = math.tanh %39 : vector<8x16xf32>
    %41 = arith.truncf %40 : vector<8x16xf32> to vector<8x16xbf16>
    %cst_19 = arith.constant dense<0.000000e+00> : vector<32x16xf32>
    %42 = tpu.matmul %38, %41, %cst_19 {dimension_numbers = #tpu.dot_dimension_numbers<[1], [0], [0], [1], [0, 0, 1, 1], [], []>} : vector<32x8xbf16>, vector<8x16xbf16>, vector<32x16xf32> -> vector<32x16xf32>
    %43 = arith.extf %37 : vector<32x16xbf16> to vector<32x16xf32>
    %44 = arith.addf %43, %42 : vector<32x16xf32>
    %45 = math.tanh %44 : vector<32x16xf32>
    %cst_20 = arith.constant dense<0.000000e+00> : vector<32x8xf32>
    %46 = tpu.matmul %37, %41, %cst_20 {dimension_numbers = #tpu.dot_dimension_numbers<[1], [1], [0], [0], [0, 0, 1, 0], [], []>} : vector<32x16xbf16>, vector<8x16xbf16>, vector<32x8xf32> -> vector<32x8xf32>
    %47 = arith.extf %38 : vector<32x8xbf16> to vector<32x8xf32>
    %48 = arith.addf %47, %46 : vector<32x8xf32>
    %49 = math.tanh %48 : vector<32x8xf32>
    %50 = vector.broadcast %2 : vector<32x1xf32> to vector<32x16xf32>
    %51 = arith.mulf %50, %45 : vector<32x16xf32>
    %cst_21 = arith.constant dense<0.000000e+00> : vector<16xf32>
    %52 = vector.multi_reduction <add>, %51, %cst_21 [0] : vector<32x16xf32> to vector<16xf32>
    %53 = vector.shape_cast %52 : vector<16xf32> to vector<1x16xf32>
    %54 = vector.broadcast %3 : vector<32x1xf32> to vector<32x8xf32>
    %55 = arith.mulf %54, %49 : vector<32x8xf32>
    %cst_22 = arith.constant dense<0.000000e+00> : vector<8xf32>
    %56 = vector.multi_reduction <add>, %55, %cst_22 [0] : vector<32x8xf32> to vector<8xf32>
    %57 = vector.shape_cast %56 : vector<8xf32> to vector<1x8xf32>
    %58 = arith.maximumf %30, %53 : vector<1x16xf32>
    %59 = arith.subf %30, %58 : vector<1x16xf32>
    %60 = math.exp %59 : vector<1x16xf32>
    %61 = arith.subf %53, %58 : vector<1x16xf32>
    %62 = math.exp %61 : vector<1x16xf32>
    %63 = arith.addf %60, %62 : vector<1x16xf32>
    %64 = tpu.reciprocal %63 : vector<1x16xf32> -> vector<1x16xf32>
    %65 = arith.mulf %60, %64 : vector<1x16xf32>
    %66 = arith.mulf %62, %64 : vector<1x16xf32>
    %67 = arith.maximumf %34, %57 : vector<1x8xf32>
    %68 = arith.subf %34, %67 : vector<1x8xf32>
    %69 = math.exp %68 : vector<1x8xf32>
    %70 = arith.subf %57, %67 : vector<1x8xf32>
    %71 = math.exp %70 : vector<1x8xf32>
    %72 = arith.addf %69, %71 : vector<1x8xf32>
    %73 = tpu.reciprocal %72 : vector<1x8xf32> -> vector<1x8xf32>
    %74 = arith.mulf %69, %73 : vector<1x8xf32>
    %75 = arith.mulf %71, %73 : vector<1x8xf32>
    %76 = arith.truncf %74 : vector<1x8xf32> to vector<1x8xbf16>
    %c0_23 = arith.constant 0 : index
    %c0_24 = arith.constant 0 : index
    %77 = vector.load %arg0[%c0_23, %c0_24] : memref<16x32xbf16, #tpu.memory_space<vmem>>, vector<8x32xbf16>
    %cst_25 = arith.constant dense<0.000000e+00> : vector<1x32xf32>
    %78 = tpu.matmul %76, %77, %cst_25 {dimension_numbers = #tpu.dot_dimension_numbers<[1], [0], [0], [1], [0, 0, 1, 1], [], []>} : vector<1x8xbf16>, vector<8x32xbf16>, vector<1x32xf32> -> vector<1x32xf32>
    %79 = arith.truncf %75 : vector<1x8xf32> to vector<1x8xbf16>
    %c8_26 = arith.constant 8 : index
    %c0_27 = arith.constant 0 : index
    %80 = vector.load %arg0[%c8_26, %c0_27] : memref<16x32xbf16, #tpu.memory_space<vmem>>, vector<8x32xbf16>
    %cst_28 = arith.constant dense<0.000000e+00> : vector<1x32xf32>
    %81 = tpu.matmul %79, %80, %cst_28 {dimension_numbers = #tpu.dot_dimension_numbers<[1], [0], [0], [1], [0, 0, 1, 1], [], []>} : vector<1x8xbf16>, vector<8x32xbf16>, vector<1x32xf32> -> vector<1x32xf32>
    %82 = arith.truncf %65 : vector<1x16xf32> to vector<1x16xbf16>
    %c0_29 = arith.constant 0 : index
    %c0_30 = arith.constant 0 : index
    %83 = vector.load %arg1[%c0_29, %c0_30] : memref<32x32xbf16, #tpu.memory_space<vmem>>, vector<32x16xbf16>
    %cst_31 = arith.constant dense<0.000000e+00> : vector<1x32xf32>
    %84 = tpu.matmul %82, %83, %cst_31 {dimension_numbers = #tpu.dot_dimension_numbers<[1], [1], [0], [0], [0, 0, 1, 0], [], []>} : vector<1x16xbf16>, vector<32x16xbf16>, vector<1x32xf32> -> vector<1x32xf32>
    %85 = arith.truncf %66 : vector<1x16xf32> to vector<1x16xbf16>
    %c0_32 = arith.constant 0 : index
    %c16 = arith.constant 16 : index
    %86 = vector.load %arg1[%c0_32, %c16] : memref<32x32xbf16, #tpu.memory_space<vmem>>, vector<32x16xbf16>
    %cst_33 = arith.constant dense<0.000000e+00> : vector<1x32xf32>
    %87 = tpu.matmul %85, %86, %cst_33 {dimension_numbers = #tpu.dot_dimension_numbers<[1], [1], [0], [0], [0, 0, 1, 0], [], []>} : vector<1x16xbf16>, vector<32x16xbf16>, vector<1x32xf32> -> vector<1x32xf32>
    %88 = tpu.concatenate %78, %81, %84, %87 in 0 : vector<1x32xf32>, vector<1x32xf32>, vector<1x32xf32>, vector<1x32xf32> -> vector<4x32xf32>
    %c0_34 = arith.constant 0 : index
    %c0_35 = arith.constant 0 : index
    %89 = vector.load %arg4[%c0_34, %c0_35] : memref<4x32xf32, #tpu.memory_space<vmem>>, vector<4x32xf32>
    tpu.vector_store %arg4[%c0_34, %c0_35], %88 {strides = array<i32>} : memref<4x32xf32, #tpu.memory_space<vmem>>, vector<4x32xf32>,
    return
  }
}

</mosaic_0001>

<llo_original>
// kernel: tpu_custom_call.1
$region0: #{tpu_custom_call.1}
  #allocation0 [shape = 'u32[]', space=smem, size = 0x4, offset = 0x4, fixed_abs, tag = 'smem constant byte address 0x4 - core index']
  #allocation1 [shape = 'u32[72,128]{1,0:T(1,128)}', space=vmem, size = 0x9000, scoped, tag = 'internal scratch']
  %s0 = inlined_call_operand.vmem [shape: bf16[16,32], index: 0, kind: input, shape index: {}]
  %s1 = inlined_call_operand.vmem [shape: bf16[32,32], index: 1, kind: input, shape index: {}]
  %s2 = inlined_call_operand.vmem [shape: bf16[96,32], index: 2, kind: input, shape index: {}]
  %s3 = inlined_call_operand.vmem [shape: f32[32,2], index: 3, kind: input, shape index: {}]
  %s4 = inlined_call_operand.hbm [shape: f32[4,32], index: 4, kind: output, shape index: {}]
  %s5 = sld [smem:[#allocation0]]
  $region26: #{tpu_custom_call.1} parent=0
    _
  %s7 = ssub.s32 1, %s5
  %s8 = scalar_select 0, %s7, %s5
  $region1: #{tpu_custom_call.1} parent=0
    #allocation2 [shape = 'u8[2048]{0}', space=vmem, size = 0x800, scoped, tag = 'output window, operand 0, single buffered']
    #allocation3 [shape = 's32[1]{0}', space=sflag, size = 0x4, scoped, tag = 'scoped memory for tpu_custom_call.1']
    %9 = vsyncpa [#allocation3], 0
    // Predicated region
    $region2: #{tpu_custom_call.1} parent=1 // pred_check
      _
    $region3: #{tpu_custom_call.1} parent=1 // pred_check_branch
      %11 = sbr.rel (0) target = $region5
    $region4: #{tpu_custom_call.1} parent=1 // pred_region
      _
    $region5: #{tpu_custom_call.1} parent=1 // pred_fallthru
      _
    // Predicated region
    $region6: #{tpu_custom_call.1} parent=1 // pred_check
      _
    $region7: #{tpu_custom_call.1} parent=1 // pred_check_branch
      %13 = sbr.rel (0) target = $region9
    $region8: #{tpu_custom_call.1} parent=1 // pred_region
      _
    $region9: #{tpu_custom_call.1} parent=1 // pred_fallthru
      _
    // Predicated region
    $region10: #{tpu_custom_call.1} parent=1 // pred_check
      _
    $region11: #{tpu_custom_call.1} parent=1 // pred_check_branch
      %15 = sbr.rel (0) target = $region13
    $region12: #{tpu_custom_call.1} parent=1 // pred_region
      _
    $region13: #{tpu_custom_call.1} parent=1 // pred_fallthru
      _
    // Predicated region
    $region14: #{tpu_custom_call.1} parent=1 // pred_check
      _
    $region15: #{tpu_custom_call.1} parent=1 // pred_check_branch
      %17 = sbr.rel (0) target = $region17
    $region16: #{tpu_custom_call.1} parent=1 // pred_region
      _
    $region17: #{tpu_custom_call.1} parent=1 // pred_fallthru
      _
    %v19 = vld [vmem:[%s2] sm:$0xf]
    %v20 = vld [vmem:[%s2 + $0x4] sm:$0xf]
    %v21 = vld [vmem:[%s2 + $0x8] sm:$0xf]
    %v22 = vld [vmem:[%s2 + $0xc] sm:$0xf]
    %v23 = vld [vmem:[%s2 + $0x10] sm:$0xf]
    %v24 = vld [vmem:[%s2 + $0x14] sm:$0xf]
    %v25 = vld [vmem:[%s2 + $0x18] sm:$0xf]
    %v26 = vld [vmem:[%s2 + $0x1c] sm:$0xf]
    %v27 = vld [vmem:[%s2 + $0x20] sm:$0xf]
    %v28 = vld [vmem:[%s2 + $0x24] sm:$0xf]
    %v29 = vld [vmem:[%s2 + $0x28] sm:$0xf]
    %v30 = vld [vmem:[%s2 + $0x2c] sm:$0xf]
    %v31 = vld [vmem:[%s3] sm:$0xff]
    %v32 = vld [vmem:[%s3 + $0x8] sm:$0xff]
    %v33 = vld [vmem:[%s3 + $0x10] sm:$0xff]
    %v34 = vld [vmem:[%s3 + $0x18] sm:$0xff]
    %v35 = vld [vmem:[%s1] sm:$0xf]
    %v36 = vld [vmem:[%s1 + $0x4] sm:$0xf]
    %v37 = vld [vmem:[%s1 + $0x8] sm:$0xf]
    %v38 = vld [vmem:[%s1 + $0xc] sm:$0xf]
    %v47 = vunpack.c.l.b16 %v19
    %v48 = vunpack.c.l.b16 %v20
    %v49 = vunpack.c.l.b16 %v21
    %v50 = vunpack.c.l.b16 %v22
    %v51 = vunpack.c.l.b16 %v23
    %v52 = vunpack.c.l.b16 %v24
    %v53 = vunpack.c.l.b16 %v25
    %v54 = vunpack.c.l.b16 %v26
    %v55 = vpack.c.b16 %v48, %v47
    %v56 = vpack.c.b16 %v50, %v49
    %v57 = vpack.c.b16 %v52, %v51
    %v58 = vpack.c.b16 %v54, %v53
    %v63 = vunpack.c.l.b16 %v35
    %v64 = vunpack.c.l.b16 %v36
    %v65 = vunpack.c.l.b16 %v37
    %v66 = vunpack.c.l.b16 %v38
    %v67 = vpack.c.b16 %v64, %v63
    %v68 = vpack.c.b16 %v66, %v65
    %vm71 = vcmask 261120
    %v73 = vsel %vm71, %v55, 0
    %v76 = vsel %vm71, %v56, 0
    %v79 = vsel %vm71, %v57, 0
    %v82 = vsel %vm71, %v58, 0
    %84 = vmatpush.bf16.msra.mxu0 0
    %85 = vmatpush.bf16.msra.mxu0 0
    %86 = vmatpush.bf16.msra.mxu0 0
    %87 = vmatpush.bf16.msra.mxu0 0
    %88 = vmatpush.bf16.msra.mxu0 0
    %89 = vmatpush.bf16.msra.mxu0 0
    %90 = vmatpush.bf16.msra.mxu0 %v68
    %91 = vmatpush.bf16.msra.mxu0 %v67
    %92 = vmatmul.bf16.gmra.mxu0 %v73
    %v93 = vpop.f32.mrf.mxu0
    %v94 = vadd.f32 0.0, %v93
    %v95 = vpop.f32.mrf.mxu0
    %v96 = vadd.f32 0.0, %v95
    %97 = vmatmul.bf16.gmra.mxu0 %v76
    %v98 = vpop.f32.mrf.mxu0
    %v99 = vadd.f32 0.0, %v98
    %v100 = vpop.f32.mrf.mxu0
    %v101 = vadd.f32 0.0, %v100
    %102 = vmatmul.bf16.gmra.mxu0 %v79
    %v103 = vpop.f32.mrf.mxu0
    %v104 = vadd.f32 0.0, %v103
    %v105 = vpop.f32.mrf.mxu0
    %v106 = vadd.f32 0.0, %v105
    %107 = vmatmul.bf16.gmra.mxu0 %v82
    %v108 = vpop.f32.mrf.mxu0
    %v109 = vadd.f32 0.0, %v108
    %v110 = vpop.f32.mrf.mxu0
    %v111 = vadd.f32 0.0, %v110
    %112 = vdwg.mxu0
    %v113 = vpack.c.bf16 %v94, %v94
    %v114 = vpack.c.bf16 %v96, %v96
    %v115 = vpack.c.bf16 %v99, %v99
    %v116 = vpack.c.bf16 %v101, %v101
    %v117 = vpack.c.bf16 %v104, %v104
    %v118 = vpack.c.bf16 %v106, %v106
    %v119 = vpack.c.bf16 %v109, %v109
    %v120 = vpack.c.bf16 %v111, %v111
    %v121 = vld [vmem:[%s0] sm:$0xf]
    %v122 = vld [vmem:[%s0 + $0x4] sm:$0xf]
    %v127 = vunpack.c.l.b16 %v27
    %v128 = vunpack.c.l.b16 %v28
    %v129 = vunpack.c.l.b16 %v29
    %v130 = vunpack.c.l.b16 %v30
    %v131 = vpack.c.b16 %v128, %v127
    %v132 = vpack.c.b16 %v130, %v129
    %v135 = vunpack.c.l.b16 %v121
    %v136 = vunpack.c.l.b16 %v122
    %v137 = vpack.c.b16 %v136, %v135
    %v139 = vsel %vm71, %v131, 0
    %v142 = vsel %vm71, %v132, 0
    %v145 = vsel %vm71, %v137, 0
    %147 = vmatpush.bf16.xpose.msra.mxu0 0
    %148 = vmatpush.bf16.xpose.msra.mxu0 0
    %149 = vmatpush.bf16.xpose.msra.mxu0 0
    %150 = vmatpush.bf16.xpose.msra.mxu0 0
    %151 = vmatpush.bf16.xpose.msra.mxu0 0
    %152 = vmatpush.bf16.xpose.msra.mxu0 0
    %153 = vmatpush.bf16.xpose.msra.mxu0 0
    %154 = vmatpush.bf16.xpose.msra.mxu0 %v145
    %155 = vmatmul.bf16.gmra.mxu0 %v139
    %v156 = vpop.f32.mrf.mxu0
    %v157 = vadd.f32 0.0, %v156
    %v158 = vpop.f32.mrf.mxu0
    %v159 = vadd.f32 0.0, %v158
    %160 = vmatmul.bf16.gmra.mxu0 %v142
    %v161 = vpop.f32.mrf.mxu0
    %v162 = vadd.f32 0.0, %v161
    %v163 = vpop.f32.mrf.mxu0
    %v164 = vadd.f32 0.0, %v163
    %165 = vdwg.mxu0
    %v166 = vpack.c.bf16 %v157, %v157
    %v167 = vpack.c.bf16 %v159, %v159
    %v168 = vpack.c.bf16 %v162, %v162
    %v169 = vpack.c.bf16 %v164, %v164
    %v170 = vld [vmem:[%s0] sm:$0xf]
    %v175 = vunpack.c.l.b16 %v113
    %v176 = vunpack.c.l.b16 %v114
    %v177 = vunpack.c.l.b16 %v115
    %v178 = vunpack.c.l.b16 %v116
    %v179 = vpack.c.b16 %v176, %v175
    %v180 = vpack.c.b16 %v178, %v177
    %v184 = vsel %vm71, %v170, 0
    %186 = vmatpush.bf16.msra.mxu0 0
    %187 = vmatpush.bf16.msra.mxu0 0
    %188 = vmatpush.bf16.msra.mxu0 0
    %189 = vmatpush.bf16.msra.mxu0 0
    %190 = vmatpush.bf16.msra.mxu0 0
    %191 = vmatpush.bf16.msra.mxu0 0
    %192 = vmatpush.bf16.msra.mxu0 %v180
    %193 = vmatpush.bf16.msra.mxu0 %v179
    %194 = vmatmul.bf16.gmra.mxu0 %v184
    %v195 = vpop.f32.mrf.mxu0
    %v196 = vadd.f32 0.0, %v195
    %v197 = vpop.f32.mrf.mxu0
    %198 = vdwg.mxu0
    %v199 = vtanh.pop %v196
    %v200 = vpack.c.bf16 %v199, %v199
    %v205 = vunpack.c.l.b16 %v166
    %v206 = vunpack.c.l.b16 %v167
    %v207 = vunpack.c.l.b16 %v168
    %v208 = vunpack.c.l.b16 %v169
    %v209 = vpack.c.b16 %v206, %v205
    %v210 = vpack.c.b16 %v208, %v207
    %vm211 = vcmask 64512
    %v213 = vsel %vm211, %v209, 0
    %v216 = vsel %vm211, %v210, 0
    %vm218 = vcmask 1043456
    %v220 = vsel %vm218, %v200, 0
    %222 = vmatpush.bf16.msra.mxu0 0
    %223 = vmatpush.bf16.msra.mxu0 0
    %224 = vmatpush.bf16.msra.mxu0 0
    %225 = vmatpush.bf16.msra.mxu0 0
    %226 = vmatpush.bf16.msra.mxu0 0
    %227 = vmatpush.bf16.msra.mxu0 0
    %228 = vmatpush.bf16.msra.mxu0 0
    %229 = vmatpush.bf16.msra.mxu0 %v220
    %230 = vmatmul.bf16.gmra.mxu0 %v213
    %v231 = vpop.f32.mrf.mxu0
    %v232 = vadd.f32 0.0, %v231
    %v233 = vpop.f32.mrf.mxu0
    %v234 = vadd.f32 0.0, %v233
    %235 = vmatmul.bf16.gmra.mxu0 %v216
    %v236 = vpop.f32.mrf.mxu0
    %v237 = vadd.f32 0.0, %v236
    %v238 = vpop.f32.mrf.mxu0
    %v239 = vadd.f32 0.0, %v238
    %240 = vdwg.mxu0
    %v241 = vunpack.c.l.bf16 %v117
    %v242 = vunpack.c.l.bf16 %v118
    %v243 = vunpack.c.l.bf16 %v119
    %v244 = vunpack.c.l.bf16 %v120
    %v245 = vadd.f32 %v241, %v232
    %v246 = vadd.f32 %v242, %v234
    %v247 = vadd.f32 %v243, %v237
    %v248 = vadd.f32 %v244, %v239
    %v249 = vtanh.pop %v245
    %v250 = vtanh.pop %v246
    %v251 = vtanh.pop %v247
    %v252 = vtanh.pop %v248
    %v257 = vunpack.c.l.b16 %v117
    %v258 = vunpack.c.l.b16 %v118
    %v259 = vunpack.c.l.b16 %v119
    %v260 = vunpack.c.l.b16 %v120
    %v261 = vpack.c.b16 %v258, %v257
    %v262 = vpack.c.b16 %v260, %v259
    %vm263 = vcmask 130048
    %v265 = vsel %vm263, %v261, 0
    %v268 = vsel %vm263, %v262, 0
    %v270 = vsel %vm263, %v200, 0
    %272 = vmatpush.bf16.xpose.msra.mxu0 0
    %273 = vmatpush.bf16.xpose.msra.mxu0 0
    %274 = vmatpush.bf16.xpose.msra.mxu0 0
    %275 = vmatpush.bf16.xpose.msra.mxu0 0
    %276 = vmatpush.bf16.xpose.msra.mxu0 0
    %277 = vmatpush.bf16.xpose.msra.mxu0 0
    %278 = vmatpush.bf16.xpose.msra.mxu0 0
    %279 = vmatpush.bf16.xpose.msra.mxu0 %v270
    %280 = vmatmul.bf16.gmra.mxu0 %v265
    %v281 = vpop.f32.mrf.mxu0
    %v282 = vadd.f32 0.0, %v281
    %v283 = vpop.f32.mrf.mxu0
    %v284 = vadd.f32 0.0, %v283
    %285 = vmatmul.bf16.gmra.mxu0 %v268
    %v286 = vpop.f32.mrf.mxu0
    %v287 = vadd.f32 0.0, %v286
    %v288 = vpop.f32.mrf.mxu0
    %v289 = vadd.f32 0.0, %v288
    %290 = vdwg.mxu0
    %v291 = vunpack.c.l.bf16 %v166
    %v292 = vunpack.c.l.bf16 %v167
    %v293 = vunpack.c.l.bf16 %v168
    %v294 = vunpack.c.l.bf16 %v169
    %v295 = vadd.f32 %v291, %v282
    %v296 = vadd.f32 %v292, %v284
    %v297 = vadd.f32 %v293, %v287
    %v298 = vadd.f32 %v294, %v289
    %v299 = vtanh.pop %v295
    %v300 = vtanh.pop %v296
    %v301 = vtanh.pop %v297
    %v302 = vtanh.pop %v298
    %304 = vset.pattern.permute.xlu0 0
    %305 = vperm.xlu0 %304, %v31
    %v306 = vpop.permute.xlu0 %305
    %309 = vset.pattern.permute.xlu0 0
    %310 = vperm.xlu0 %309, %v32
    %v311 = vpop.permute.xlu0 %310
    %314 = vset.pattern.permute.xlu0 0
    %315 = vperm.xlu0 %314, %v33
    %v316 = vpop.permute.xlu0 %315
    %319 = vset.pattern.permute.xlu0 0
    %320 = vperm.xlu0 %319, %v34
    %v321 = vpop.permute.xlu0 %320
    %v323 = vmul.f32 %v306, %v249
    %v324 = vmul.f32 %v311, %v250
    %v325 = vmul.f32 %v316, %v251
    %v326 = vmul.f32 %v321, %v252
    %v327 = vsel %vm263, %v323, 0.0
    %v328 = vsel %vm263, %v324, 0.0
    %v329 = vadd.f32 %v327, %v328
    %v330 = vsel %vm263, %v325, 0.0
    %v331 = vadd.f32 %v329, %v330
    %v332 = vsel %vm263, %v326, 0.0
    %v333 = vadd.f32 %v331, %v332
    %v334 = vrot.slane %v333, 4
    %v335 = vadd.f32 %v333, %v334
    %v336 = vrot.slane %v335, 2
    %v337 = vadd.f32 %v335, %v336
    %v338 = vrot.slane %v337, 1
    %v339 = vadd.f32 %v337, %v338
    %340 = vset.pattern.permute.xlu0 1
    %341 = vperm.xlu0 %340, %v31
    %v342 = vpop.permute.xlu0 %341
    %344 = vset.pattern.permute.xlu0 1
    %345 = vperm.xlu0 %344, %v32
    %v346 = vpop.permute.xlu0 %345
    %348 = vset.pattern.permute.xlu0 1
    %349 = vperm.xlu0 %348, %v33
    %v350 = vpop.permute.xlu0 %349
    %352 = vset.pattern.permute.xlu0 1
    %353 = vperm.xlu0 %352, %v34
    %v354 = vpop.permute.xlu0 %353
    %v356 = vmul.f32 %v342, %v299
    %v357 = vmul.f32 %v346, %v300
    %v358 = vmul.f32 %v350, %v301
    %v359 = vmul.f32 %v354, %v302
    %v360 = vsel %vm211, %v356, 0.0
    %v361 = vsel %vm211, %v357, 0.0
    %v362 = vadd.f32 %v360, %v361
    %v363 = vsel %vm211, %v358, 0.0
    %v364 = vadd.f32 %v362, %v363
    %v365 = vsel %vm211, %v359, 0.0
    %v366 = vadd.f32 %v364, %v365
    %v367 = vrot.slane %v366, 4
    %v368 = vadd.f32 %v366, %v367
    %v369 = vrot.slane %v368, 2
    %v370 = vadd.f32 %v368, %v369
    %v371 = vrot.slane %v370, 1
    %v372 = vadd.f32 %v370, %v371
    %373 = vrot.lane.b32.xlu0 %v179, 112
    %v374 = vpop.permute.xlu0 %373
    %375 = vrot.lane.b32.xlu0 %v180, 112
    %v376 = vpop.permute.xlu0 %375
    %v380 = vsel %vm71, %v122, 0
    %382 = vmatpush.bf16.msra.mxu0 0
    %383 = vmatpush.bf16.msra.mxu0 0
    %384 = vmatpush.bf16.msra.mxu0 0
    %385 = vmatpush.bf16.msra.mxu0 0
    %386 = vmatpush.bf16.msra.mxu0 0
    %387 = vmatpush.bf16.msra.mxu0 0
    %388 = vmatpush.bf16.msra.mxu0 %v376
    %389 = vmatpush.bf16.msra.mxu0 %v374
    %390 = vmatmul.bf16.gmra.mxu0 %v380
    %v391 = vpop.f32.mrf.mxu0
    %v392 = vadd.f32 0.0, %v391
    %v393 = vpop.f32.mrf.mxu0
    %394 = vdwg.mxu0
    %v395 = vtanh.pop %v392
    %v396 = vpack.c.bf16 %v395, %v395
    %397 = vrot.lane.b32.xlu0 %v209, 120
    %v398 = vpop.permute.xlu0 %397
    %399 = vrot.lane.b32.xlu0 %v210, 120
    %v400 = vpop.permute.xlu0 %399
    %v402 = vsel %vm211, %v398, 0
    %v405 = vsel %vm211, %v400, 0
    %v408 = vsel %vm218, %v396, 0
    %410 = vmatpush.bf16.msra.mxu0 0
    %411 = vmatpush.bf16.msra.mxu0 0
    %412 = vmatpush.bf16.msra.mxu0 0
    %413 = vmatpush.bf16.msra.mxu0 0
    %414 = vmatpush.bf16.msra.mxu0 0
    %415 = vmatpush.bf16.msra.mxu0 0
    %416 = vmatpush.bf16.msra.mxu0 0
    %417 = vmatpush.bf16.msra.mxu0 %v408
    %418 = vmatmul.bf16.gmra.mxu0 %v402
    %v419 = vpop.f32.mrf.mxu0
    %v420 = vadd.f32 0.0, %v419
    %v421 = vpop.f32.mrf.mxu0
    %v422 = vadd.f32 0.0, %v421
    %423 = vmatmul.bf16.gmra.mxu0 %v405
    %v424 = vpop.f32.mrf.mxu0
    %v425 = vadd.f32 0.0, %v424
    %v426 = vpop.f32.mrf.mxu0
    %v427 = vadd.f32 0.0, %v426
    %428 = vdwg.mxu0
    %433 = vrot.lane.b32.xlu0 %v420, 16
    %v434 = vpop.permute.xlu0 %433
    %435 = vrot.lane.b32.xlu0 %v422, 16
    %v436 = vpop.permute.xlu0 %435
    %437 = vrot.lane.b32.xlu0 %v425, 16
    %v438 = vpop.permute.xlu0 %437
    %439 = vrot.lane.b32.xlu0 %v427, 16
    %v440 = vpop.permute.xlu0 %439
    %v445 = vadd.f32 %v241, %v434
    %v446 = vadd.f32 %v242, %v436
    %v447 = vadd.f32 %v243, %v438
    %v448 = vadd.f32 %v244, %v440
    %v449 = vtanh.pop %v445
    %v450 = vtanh.pop %v446
    %v451 = vtanh.pop %v447
    %v452 = vtanh.pop %v448
    %453 = vrot.lane.b32.xlu0 %v261, 112
    %v454 = vpop.permute.xlu0 %453
    %455 = vrot.lane.b32.xlu0 %v262, 112
    %v456 = vpop.permute.xlu0 %455
    %v458 = vsel %vm263, %v454, 0
    %v461 = vsel %vm263, %v456, 0
    %v463 = vsel %vm263, %v396, 0
    %465 = vmatpush.bf16.xpose.msra.mxu0 0
    %466 = vmatpush.bf16.xpose.msra.mxu0 0
    %467 = vmatpush.bf16.xpose.msra.mxu0 0
    %468 = vmatpush.bf16.xpose.msra.mxu0 0
    %469 = vmatpush.bf16.xpose.msra.mxu0 0
    %470 = vmatpush.bf16.xpose.msra.mxu0 0
    %471 = vmatpush.bf16.xpose.msra.mxu0 0
    %472 = vmatpush.bf16.xpose.msra.mxu0 %v463
    %473 = vmatmul.bf16.gmra.mxu0 %v458
    %v474 = vpop.f32.mrf.mxu0
    %v475 = vadd.f32 0.0, %v474
    %v476 = vpop.f32.mrf.mxu0
    %v477 = vadd.f32 0.0, %v476
    %478 = vmatmul.bf16.gmra.mxu0 %v461
    %v479 = vpop.f32.mrf.mxu0
    %v480 = vadd.f32 0.0, %v479
    %v481 = vpop.f32.mrf.mxu0
    %v482 = vadd.f32 0.0, %v481
    %483 = vdwg.mxu0
    %488 = vrot.lane.b32.xlu0 %v475, 8
    %v489 = vpop.permute.xlu0 %488
    %490 = vrot.lane.b32.xlu0 %v477, 8
    %v491 = vpop.permute.xlu0 %490
    %492 = vrot.lane.b32.xlu0 %v480, 8
    %v493 = vpop.permute.xlu0 %492
    %494 = vrot.lane.b32.xlu0 %v482, 8
    %v495 = vpop.permute.xlu0 %494
    %v500 = vadd.f32 %v291, %v489
    %v501 = vadd.f32 %v292, %v491
    %v502 = vadd.f32 %v293, %v493
    %v503 = vadd.f32 %v294, %v495
    %v504 = vtanh.pop %v500
    %v505 = vtanh.pop %v501
    %v506 = vtanh.pop %v502
    %v507 = vtanh.pop %v503
    %v508 = vmul.f32 %v306, %v449
    %v509 = vmul.f32 %v311, %v450
    %v510 = vmul.f32 %v316, %v451
    %v511 = vmul.f32 %v321, %v452
    %vm512 = vcmask 261248
    %v513 = vsel %vm512, %v508, 0.0
    %v514 = vsel %vm512, %v509, 0.0
    %v515 = vadd.f32 %v513, %v514
    %v516 = vsel %vm512, %v510, 0.0
    %v517 = vadd.f32 %v515, %v516
    %v518 = vsel %vm512, %v511, 0.0
    %v519 = vadd.f32 %v517, %v518
    %v520 = vrot.slane %v519, 4
    %v521 = vadd.f32 %v519, %v520
    %v522 = vrot.slane %v521, 2
    %v523 = vadd.f32 %v521, %v522
    %v524 = vrot.slane %v523, 1
    %v525 = vadd.f32 %v523, %v524
    %v526 = vmul.f32 %v342, %v504
    %v527 = vmul.f32 %v346, %v505
    %v528 = vmul.f32 %v350, %v506
    %v529 = vmul.f32 %v354, %v507
    %vm530 = vcmask 130112
    %v531 = vsel %vm530, %v526, 0.0
    %v532 = vsel %vm530, %v527, 0.0
    %v533 = vadd.f32 %v531, %v532
    %v534 = vsel %vm530, %v528, 0.0
    %v535 = vadd.f32 %v533, %v534
    %v536 = vsel %vm530, %v529, 0.0
    %v537 = vadd.f32 %v535, %v536
    %v538 = vrot.slane %v537, 4
    %v539 = vadd.f32 %v537, %v538
    %v540 = vrot.slane %v539, 2
    %v541 = vadd.f32 %v539, %v540
    %v542 = vrot.slane %v541, 1
    %v543 = vadd.f32 %v541, %v542
    %545 = vrot.lane.b32.xlu0 %v525, 112
    %v546 = vpop.permute.xlu0 %545
    %v548 = vmax.f32 %v339, %v546
    %v549 = vsub.f32 %v339, %v548
    %v550 = vmul.f32 %v549, 1.442695
    %v551 = vpow.pop %v550
    %553 = vrot.lane.b32.xlu0 %v548, 16
    %v554 = vpop.permute.xlu0 %553
    %v556 = vsub.f32 %v525, %v554
    %v557 = vmul.f32 %v556, 1.442695
    %v558 = vpow.pop %v557
    %560 = vrot.lane.b32.xlu0 %v558, 112
    %v561 = vpop.permute.xlu0 %560
    %v563 = vadd.f32 %v551, %v561
    %v564 = vrcp.pop %v563
    %v565 = vmul.f32 %v563, %v564
    %v566 = vsub.f32 1.0, %v565
    %v567 = vmul.f32 %v564, %v566
    %v568 = vadd.f32 %v564, %v567
    %vm569 = vweird.f32 %v563
    %vm570 = vweird.f32 %v564
    %vm571 = vmor %vm569, %vm570
    %v572 = vsel %vm571, %v564, %v568
    %v573 = vand.u32 2147483647, %v563
    %vm574 = vcmp.eq.f32.partialorder %v573, 8.507059e+37
    %v575 = vand.u32 %v563, 2147483648
    %v576 = vor.u32 1.1754944e-38, %v575
    %v577 = vsel %vm574, %v576, %v572
    %v578 = vmul.f32 %v551, %v577
    %580 = vrot.lane.b32.xlu0 %v577, 16
    %v581 = vpop.permute.xlu0 %580
    %v583 = vmul.f32 %v558, %v581
    %585 = vrot.lane.b32.xlu0 %v543, 120
    %v586 = vpop.permute.xlu0 %585
    %v588 = vmax.f32 %v372, %v586
    %v589 = vsub.f32 %v372, %v588
    %v590 = vmul.f32 %v589, 1.442695
    %v591 = vpow.pop %v590
    %593 = vrot.lane.b32.xlu0 %v588, 8
    %v594 = vpop.permute.xlu0 %593
    %v596 = vsub.f32 %v543, %v594
    %v597 = vmul.f32 %v596, 1.442695
    %v598 = vpow.pop %v597
    %600 = vrot.lane.b32.xlu0 %v598, 120
    %v601 = vpop.permute.xlu0 %600
    %v603 = vadd.f32 %v591, %v601
    %v604 = vrcp.pop %v603
    %v605 = vmul.f32 %v603, %v604
    %v606 = vsub.f32 1.0, %v605
    %v607 = vmul.f32 %v604, %v606
    %v608 = vadd.f32 %v604, %v607
    %vm609 = vweird.f32 %v603
    %vm610 = vweird.f32 %v604
    %vm611 = vmor %vm609, %vm610
    %v612 = vsel %vm611, %v604, %v608
    %v613 = vand.u32 2147483647, %v603
    %vm614 = vcmp.eq.f32.partialorder %v613, 8.507059e+37
    %v615 = vand.u32 %v603, 2147483648
    %v616 = vor.u32 1.1754944e-38, %v615
    %v617 = vsel %vm614, %v616, %v612
    %v618 = vmul.f32 %v591, %v617
    %620 = vrot.lane.b32.xlu0 %v617, 8
    %v621 = vpop.permute.xlu0 %620
    %v623 = vmul.f32 %v598, %v621
    %v624 = vpack.c.bf16 %v618, %v618
    %v626 = vsel %vm211, %v624, 0
    %v628 = vsel %vm218, %v170, 0
    %630 = vmatpush.bf16.msra.mxu0 0
    %631 = vmatpush.bf16.msra.mxu0 0
    %632 = vmatpush.bf16.msra.mxu0 0
    %633 = vmatpush.bf16.msra.mxu0 0
    %634 = vmatpush.bf16.msra.mxu0 0
    %635 = vmatpush.bf16.msra.mxu0 0
    %636 = vmatpush.bf16.msra.mxu0 0
    %637 = vmatpush.bf16.msra.mxu0 %v628
    %638 = vmatmul.bf16.gmra.mxu0 %v626
    %v639 = vpop.f32.mrf.mxu0
    %v640 = vadd.f32 0.0, %v639
    %v641 = vpop.f32.mrf.mxu0
    %642 = vdwg.mxu0
    %v643 = vpack.c.bf16 %v623, %v623
    %645 = vrot.lane.b32.xlu0 %v643, 120
    %v646 = vpop.permute.xlu0 %645
    %v648 = vsel %vm211, %v646, 0
    %v650 = vsel %vm218, %v122, 0
    %652 = vmatpush.bf16.msra.mxu0 0
    %653 = vmatpush.bf16.msra.mxu0 0
    %654 = vmatpush.bf16.msra.mxu0 0
    %655 = vmatpush.bf16.msra.mxu0 0
    %656 = vmatpush.bf16.msra.mxu0 0
    %657 = vmatpush.bf16.msra.mxu0 0
    %658 = vmatpush.bf16.msra.mxu0 0
    %659 = vmatpush.bf16.msra.mxu0 %v650
    %660 = vmatmul.bf16.gmra.mxu0 %v648
    %v661 = vpop.f32.mrf.mxu0
    %v662 = vadd.f32 0.0, %v661
    %v663 = vpop.f32.mrf.mxu0
    %664 = vdwg.mxu0
    %v665 = vpack.c.bf16 %v578, %v578
    %v667 = vsel %vm263, %v665, 0
    %v670 = vsel %vm263, %v67, 0
    %v673 = vsel %vm263, %v68, 0
    %675 = vmatpush.bf16.xpose.msra.mxu0 0
    %676 = vmatpush.bf16.xpose.msra.mxu0 0
    %677 = vmatpush.bf16.xpose.msra.mxu0 0
    %678 = vmatpush.bf16.xpose.msra.mxu0 0
    %679 = vmatpush.bf16.xpose.msra.mxu0 0
    %680 = vmatpush.bf16.xpose.msra.mxu0 0
    %681 = vmatpush.bf16.xpose.msra.mxu0 %v673
    %682 = vmatpush.bf16.xpose.msra.mxu0 %v670
    %683 = vmatmul.bf16.gmra.mxu0 %v667
    %v684 = vpop.f32.mrf.mxu0
    %v685 = vadd.f32 0.0, %v684
    %v686 = vpop.f32.mrf.mxu0
    %687 = vdwg.mxu0
    %v688 = vpack.c.bf16 %v583, %v583
    %690 = vrot.lane.b32.xlu0 %v688, 112
    %v691 = vpop.permute.xlu0 %690
    %692 = vrot.lane.b32.xlu0 %v67, 112
    %v693 = vpop.permute.xlu0 %692
    %694 = vrot.lane.b32.xlu0 %v68, 112
    %v695 = vpop.permute.xlu0 %694
    %v697 = vsel %vm263, %v691, 0
    %v700 = vsel %vm263, %v693, 0
    %v703 = vsel %vm263, %v695, 0
    %705 = vmatpush.bf16.xpose.msra.mxu0 0
    %706 = vmatpush.bf16.xpose.msra.mxu0 0
    %707 = vmatpush.bf16.xpose.msra.mxu0 0
    %708 = vmatpush.bf16.xpose.msra.mxu0 0
    %709 = vmatpush.bf16.xpose.msra.mxu0 0
    %710 = vmatpush.bf16.xpose.msra.mxu0 0
    %711 = vmatpush.bf16.xpose.msra.mxu0 %v703
    %712 = vmatpush.bf16.xpose.msra.mxu0 %v700
    %713 = vmatmul.bf16.gmra.mxu0 %v697
    %v714 = vpop.f32.mrf.mxu0
    %v715 = vadd.f32 0.0, %v714
    %v716 = vpop.f32.mrf.mxu0
    %717 = vdwg.mxu0
    %v719 = vrot.slane %v662, 7
    %v722 = vrot.slane %v685, 6
    %v725 = vrot.slane %v715, 5
    %vm727 = vcmask 1040384
    %v728 = vsel %vm727, %v640, %v719
    %vm729 = vcmask 1041408
    %v730 = vsel %vm729, %v728, %v722
    %vm731 = vcmask 1042432
    %v732 = vsel %vm731, %v730, %v725
    %vm733 = vcmask 257024
    %734 = vst.msk [vmem:[#allocation2] sm:$0xf] %vm733, %v732
    // Predicated region
    $region18: #{tpu_custom_call.1} parent=1 // pred_check
      _
    $region19: #{tpu_custom_call.1} parent=1 // pred_check_branch
      %736 = sbr.rel (0) target = $region21
    $region20: #{tpu_custom_call.1} parent=1 // pred_region
      %738 = vsyncadd [#allocation3], 0
      %s740 = sshll.u32 [#allocation2], 4
      %s741 = int_to_ptr.vmem [resolvable:$true] %s740
      %s742 = sshll.u32 %s4, 4
      %s743 = int_to_ptr.hbm [resolvable:$true] %s742
      %745 = dma.vmem_to_hbm [thread:$0]  %s741, 64, %s743, [#allocation3]
    $region21: #{tpu_custom_call.1} parent=1 // pred_fallthru
      _
    // Predicated region
    $region22: #{tpu_custom_call.1} parent=1 // pred_check
      _
    $region23: #{tpu_custom_call.1} parent=1 // pred_check_branch
      %747 = sbr.rel (0) target = $region25
    $region24: #{tpu_custom_call.1} parent=1 // pred_region
      %749 = dma.done [#allocation3], 64
    $region25: #{tpu_custom_call.1} parent=1 // pred_fallthru
      _
    %750 = vsyncpa [#allocation3], 1

</llo_original>
